<compile_context>
chip_gen: v7x
topology: tpu7x:2x2x1
jax: 0.10.0
libtpu: 0.0.40
codegen_flags: <defaults>
</compile_context>

<pallas_src>
import jax
import jax.numpy as jnp
from jax.experimental import pallas as pl
from jax.experimental.pallas import tpu as pltpu

_LANES = 128            # lane (fast) axis of every VMEM tile
_MAX_TILE_ROWS = 2048   # 2048x128 f32 = 1 MiB/stream/buffer; 3 streams x 2 bufs = 6 MiB
                        # (fits v5e's 16 MiB default scoped VMEM with headroom)


def _round_up(x: int, m: int) -> int:
    return (x + m - 1) // m * m


def _simple_model_kernel(w_ref, user_ref, item_ref, out_ref):
    # w_ref lives in SMEM: [w0, w1, b] — read once into scalar locals.
    w0 = w_ref[0]
    w1 = w_ref[1]
    b = w_ref[2]
    # Fused cast (PyTorch .float()) + affine + sigmoid, all on the VPU/EUP.
    u = user_ref[...].astype(jnp.float32)
    v = item_ref[...].astype(jnp.float32)
    out_ref[...] = jax.nn.sigmoid(u * w0 + v * w1 + b)


def simple_model_forward(user, item, weight, bias):
    """Pallas equivalent of SimpleModel.forward.

    user, item: shape [B] (any numeric dtype; cast to f32 inside the kernel)
    weight:     shape [1, 2]  (nn.Linear(2, 1).weight)
    bias:       shape [1]     (nn.Linear(2, 1).bias)
    returns:    shape [B] f32 (sigmoid output, squeezed; scalar if B == 1)
    """
    B = user.shape[0]

    # Lane-dense (rows, 128) layout; pad ONLY to the 128-lane boundary.
    rows = pl.cdiv(B, _LANES)
    pad = rows * _LANES - B

    if pad:
        # Ragged tail: one small pad to the lane boundary.
        user2d = jnp.pad(user, (0, pad)).reshape(rows, _LANES)
        item2d = jnp.pad(item, (0, pad)).reshape(rows, _LANES)
    else:
        # B % 128 == 0: reshape of a contiguous array is free (no extra HBM pass).
        user2d = user.reshape(rows, _LANES)
        item2d = item.reshape(rows, _LANES)

    # Tile policy:
    #  * tiny input -> one full-array block (block dims == array dims is legal
    #    even when rows is not a multiple of 8),
    #  * otherwise aim for >= 2 balanced tiles (v7x megacore), 8-sublane
    #    aligned, capped at _MAX_TILE_ROWS. The last block may be partial and
    #    is masked by Pallas — rows are never rounded up to a tile multiple.
    if rows <= 8:
        tile_rows = rows
    else:
        tile_rows = min(_MAX_TILE_ROWS, _round_up(pl.cdiv(rows, 2), 8))
    num_tiles = pl.cdiv(rows, tile_rows)

    # Pack scalar params for SMEM: [w0, w1, b]
    wvec = jnp.concatenate(
        [weight.reshape(-1).astype(jnp.float32), bias.reshape(-1).astype(jnp.float32)]
    )

    n_elem = rows * _LANES
    cost = pl.CostEstimate(
        flops=6 * n_elem,            # 2 casts + 2 muls + 2 adds per element
        transcendentals=n_elem,      # sigmoid -> one exp on the EUP
        bytes_accessed=12 * n_elem,  # 2 x 4B in + 4B out
    )

    out = pl.pallas_call(
        _simple_model_kernel,
        out_shape=jax.ShapeDtypeStruct((rows, _LANES), jnp.float32),
        grid=(num_tiles,),
        in_specs=[
            pl.BlockSpec(memory_space=pltpu.SMEM),                 # (3,) scalar params
            pl.BlockSpec((tile_rows, _LANES), lambda i: (i, 0)),   # user tile
            pl.BlockSpec((tile_rows, _LANES), lambda i: (i, 0)),   # item tile
        ],
        out_specs=pl.BlockSpec((tile_rows, _LANES), lambda i: (i, 0)),
        compiler_params=pltpu.CompilerParams(
            dimension_semantics=("parallel",),  # shard grid across TCs on v7x
        ),
        cost_estimate=cost,
    )(wvec, user2d, item2d)

    flat = out.reshape(-1)                     # free when pad == 0
    result = flat[:B] if pad else flat         # slice only in the ragged case
    # torch .squeeze() also collapses the batch dim when B == 1.
    return result.reshape(()) if B == 1 else result


if __name__ == "__main__":
    key = jax.random.PRNGKey(0)
    k_w, k_b, k_u, k_i = jax.random.split(key, 4)

    # Deterministic nn.Linear(2, 1)-style init: U(-1/sqrt(2), 1/sqrt(2))
    bound = 1.0 / jnp.sqrt(2.0)
    weight = jax.random.uniform(k_w, (1, 2), jnp.float32, -bound, bound)
    bias = jax.random.uniform(k_b, (1,), jnp.float32, -bound, bound)

    def reference(u, it):
        x = jnp.stack([u.astype(jnp.float32), it.astype(jnp.float32)], axis=1)
        return jax.nn.sigmoid(x @ weight.T + bias).squeeze()

    ok = True

    # Small batch (matches the spec's toy usage).
    B = 8
    user = jax.random.randint(k_u, (B,), 0, 100, dtype=jnp.int32)
    item = jax.random.randint(k_i, (B,), 0, 100, dtype=jnp.int32)
    out = jax.block_until_ready(simple_model_forward(user, item, weight, bias))
    ok &= out.shape == (B,) and bool(jnp.allclose(out, reference(user, item), atol=1e-6))

    # Ragged batch (exercises the lane-boundary pad + trailing slice path).
    B2 = 300
    user2 = jax.random.randint(jax.random.fold_in(k_u, 1), (B2,), 0, 100, dtype=jnp.int32)
    item2 = jax.random.randint(jax.random.fold_in(k_i, 1), (B2,), 0, 100, dtype=jnp.int32)
    out2 = jax.block_until_ready(simple_model_forward(user2, item2, weight, bias))
    ok &= out2.shape == (B2,) and bool(jnp.allclose(out2, reference(user2, item2), atol=1e-6))

    # Lane-aligned batch with a partial (masked) final block and >= 2 tiles:
    # B3 = 20 rows -> tile_rows = 16, grid = 2, second block covers only 4 rows.
    B3 = 20 * 128
    user3 = jax.random.randint(jax.random.fold_in(k_u, 2), (B3,), 0, 100, dtype=jnp.int32)
    item3 = jax.random.randint(jax.random.fold_in(k_i, 2), (B3,), 0, 100, dtype=jnp.int32)
    out3 = jax.block_until_ready(simple_model_forward(user3, item3, weight, bias))
    ok &= out3.shape == (B3,) and bool(jnp.allclose(out3, reference(user3, item3), atol=1e-6))

    assert ok, "mismatch vs. reference"
    print("KERNEL_OK")
</pallas_src>

<mosaic_0001>
module attributes {stable_mosaic.version = 11 : i64} {
  func.func @_simple_model_kernel(%arg0: i32, %arg1: memref<3xf32, #tpu.memory_space<smem>>, %arg2: memref<1x128xi32, #tpu.memory_space<vmem>>, %arg3: memref<1x128xi32, #tpu.memory_space<vmem>>, %arg4: memref<1x128xf32, #tpu.memory_space<vmem>>) attributes {dimension_semantics = [#tpu.dimension_semantics<parallel>], iteration_bounds = array<i64: 1>, scalar_prefetch = 0 : i64, scratch_operands = 0 : i64, tpu.core_type = #tpu.core_type<tc>, window_params = [{transform_indices = @transform_0, window_bounds = array<i64: 3>}, {transform_indices = @transform_1, window_bounds = array<i64: 1, 128>}, {transform_indices = @transform_2, window_bounds = array<i64: 1, 128>}, {transform_indices = @transform_3, window_bounds = array<i64: 1, 128>}]} {
    %c0 = arith.constant 0 : index
    %0 = memref.load %arg1[%c0] : memref<3xf32, #tpu.memory_space<smem>>
    %c1 = arith.constant 1 : index
    %1 = memref.load %arg1[%c1] : memref<3xf32, #tpu.memory_space<smem>>
    %c2 = arith.constant 2 : index
    %2 = memref.load %arg1[%c2] : memref<3xf32, #tpu.memory_space<smem>>
    %c0_0 = arith.constant 0 : index
    %c0_1 = arith.constant 0 : index
    %3 = vector.load %arg2[%c0_0, %c0_1] : memref<1x128xi32, #tpu.memory_space<vmem>>, vector<1x128xi32>
    %4 = arith.sitofp %3 : vector<1x128xi32> to vector<1x128xf32>
    %c0_2 = arith.constant 0 : index
    %c0_3 = arith.constant 0 : index
    %5 = vector.load %arg3[%c0_2, %c0_3] : memref<1x128xi32, #tpu.memory_space<vmem>>, vector<1x128xi32>
    %6 = arith.sitofp %5 : vector<1x128xi32> to vector<1x128xf32>
    %7 = vector.broadcast %0 : f32 to vector<1x128xf32>
    %8 = arith.mulf %4, %7 : vector<1x128xf32>
    %9 = vector.broadcast %1 : f32 to vector<1x128xf32>
    %10 = arith.mulf %6, %9 : vector<1x128xf32>
    %11 = arith.addf %8, %10 : vector<1x128xf32>
    %12 = vector.broadcast %2 : f32 to vector<1x128xf32>
    %13 = arith.addf %11, %12 : vector<1x128xf32>
    %14 = arith.negf %13 : vector<1x128xf32>
    %15 = math.exp %14 : vector<1x128xf32>
    %cst = arith.constant 1.000000e+00 : f32
    %16 = vector.broadcast %cst : f32 to vector<1x128xf32>
    %17 = arith.addf %16, %15 : vector<1x128xf32>
    %18 = arith.divf %16, %17 : vector<1x128xf32>
    %c0_4 = arith.constant 0 : index
    %c0_5 = arith.constant 0 : index
    %19 = vector.load %arg4[%c0_4, %c0_5] : memref<1x128xf32, #tpu.memory_space<vmem>>, vector<1x128xf32>
    tpu.vector_store %arg4[%c0_4, %c0_5], %18 {strides = array<i32>} : memref<1x128xf32, #tpu.memory_space<vmem>>, vector<1x128xf32>,
    return
  }
  func.func @transform_0(%arg0: i32) -> i32 {
    %c0_i32 = arith.constant 0 : i32
    %c0_i32_0 = arith.constant 0 : i32
    return %c0_i32 : i32
  }
  func.func @transform_1(%arg0: i32) -> (i32, i32) {
    %c0_i32 = arith.constant 0 : i32
    %c0_i32_0 = arith.constant 0 : i32
    return %arg0, %c0_i32 : i32, i32
  }
  func.func @transform_2(%arg0: i32) -> (i32, i32) {
    %c0_i32 = arith.constant 0 : i32
    %c0_i32_0 = arith.constant 0 : i32
    return %arg0, %c0_i32 : i32, i32
  }
  func.func @transform_3(%arg0: i32) -> (i32, i32) {
    %c0_i32 = arith.constant 0 : i32
    %c0_i32_0 = arith.constant 0 : i32
    return %arg0, %c0_i32 : i32, i32
  }
}

</mosaic_0001>

<llo_original>
// kernel: tpu_custom_call.1
$region0: #{tpu_custom_call.1}
  #allocation0 [shape = 'u32[]', space=smem, size = 0x4, offset = 0x4, fixed_abs, tag = 'smem constant byte address 0x4 - core index']
  #allocation1 [shape = 'u32[144,128]{1,0:T(1,128)}', space=vmem, size = 0x12000, scoped, tag = 'internal scratch']
  %s0 = inlined_call_operand.hbm [shape: f32[3], index: 0, kind: input, shape index: {}]
  %s1 = inlined_call_operand.vmem [shape: s32[1,128], index: 1, kind: input, shape index: {}]
  %s2 = inlined_call_operand.vmem [shape: s32[1,128], index: 2, kind: input, shape index: {}]
  %s3 = inlined_call_operand.hbm [shape: f32[1,128], index: 3, kind: output, shape index: {}]
  %s4 = sld [smem:[#allocation0]]
  $region26: #{tpu_custom_call.1} parent=0
    _
  %s6 = ssub.s32 1, %s4
  %s7 = scalar_select 0, %s6, %s4
  $region1: #{tpu_custom_call.1} parent=0
    #allocation2 [shape = 'u8[512]{0}', space=smem, size = 0x200, scoped, tag = 'input window, operand 0, single buffered']
    #allocation3 [shape = 's32[1]{0}', space=sflag, size = 0x4, scoped, tag = 'scoped memory for tpu_custom_call.1']
    #allocation4 [shape = 's32[1]{0}', space=sflag, size = 0x4, scoped, tag = 'scoped memory for tpu_custom_call.1']
    #allocation5 [shape = 'u8[512]{0}', space=vmem, size = 0x400, scoped, tag = 'output window, operand 0, single buffered']
    %8 = vsyncpa [#allocation4], 0
    %9 = vsyncpa [#allocation3], 0
    // Predicated region
    $region2: #{tpu_custom_call.1} parent=1 // pred_check
      _
    $region3: #{tpu_custom_call.1} parent=1 // pred_check_branch
      %11 = sbr.rel (0) target = $region5
    $region4: #{tpu_custom_call.1} parent=1 // pred_region
      %s13 = ssub.s32 16, 16
      %14 = vsyncadd [#allocation4], %s13
      %17 = dma.hbm_to_smem %s0, 16, [#allocation2], [#allocation4]
    $region5: #{tpu_custom_call.1} parent=1 // pred_fallthru
      _
    // Predicated region
    $region6: #{tpu_custom_call.1} parent=1 // pred_check
      _
    $region7: #{tpu_custom_call.1} parent=1 // pred_check_branch
      %19 = sbr.rel (0) target = $region9
    $region8: #{tpu_custom_call.1} parent=1 // pred_region
      _
    $region9: #{tpu_custom_call.1} parent=1 // pred_fallthru
      _
    // Predicated region
    $region10: #{tpu_custom_call.1} parent=1 // pred_check
      _
    $region11: #{tpu_custom_call.1} parent=1 // pred_check_branch
      %21 = sbr.rel (0) target = $region13
    $region12: #{tpu_custom_call.1} parent=1 // pred_region
      _
    $region13: #{tpu_custom_call.1} parent=1 // pred_fallthru
      _
    // Predicated region
    $region14: #{tpu_custom_call.1} parent=1 // pred_check
      _
    $region15: #{tpu_custom_call.1} parent=1 // pred_check_branch
      %23 = sbr.rel (0) target = $region17
    $region16: #{tpu_custom_call.1} parent=1 // pred_region
      %24 = dma.done [#allocation4], 16
    $region17: #{tpu_custom_call.1} parent=1 // pred_fallthru
      _
    %25 = sfence
    %s26 = sld [smem:[#allocation2]]
    %s27 = sld [smem:[#allocation2 + $0x1]]
    %s28 = sld [smem:[#allocation2 + $0x2]]
    %v29 = vld [vmem:[%s1] sm:$0x1]
    %v30 = vcvt.s32.f32 %v29
    %v31 = vld [vmem:[%s2] sm:$0x1]
    %v32 = vcvt.s32.f32 %v31
    %v33 = vstv %s26
    %v34 = vmul.f32 %v30, %v33
    %v35 = vstv %s27
    %v36 = vmul.f32 %v32, %v35
    %v37 = vadd.f32 %v34, %v36
    %v38 = vstv %s28
    %v39 = vadd.f32 %v37, %v38
    %v40 = vxor.u32 %v39, 2147483648
    %v41 = vmul.f32 %v40, 1.442695
    %v42 = vpow.pop %v41
    %v43 = vadd.f32 %v42, 1.0
    %v44 = vrcp.pop %v43
    %v45 = vmul.f32 1.0, %v44
    %46 = vst [vmem:[#allocation5] sm:$0x1] %v45
    // Predicated region
    $region18: #{tpu_custom_call.1} parent=1 // pred_check
      _
    $region19: #{tpu_custom_call.1} parent=1 // pred_check_branch
      %48 = sbr.rel (0) target = $region21
    $region20: #{tpu_custom_call.1} parent=1 // pred_region
      %s50 = ssub.s32 16, 16
      %51 = vsyncadd [#allocation3], %s50
      %s53 = sshll.u32 [#allocation5], 4
      %s54 = int_to_ptr.vmem [resolvable:$true] %s53
      %56 = dma.vmem_to_hbm [thread:$0]  %s54, 16, %s3, [#allocation3]
    $region21: #{tpu_custom_call.1} parent=1 // pred_fallthru
      _
    // Predicated region
    $region22: #{tpu_custom_call.1} parent=1 // pred_check
      _
    $region23: #{tpu_custom_call.1} parent=1 // pred_check_branch
      %58 = sbr.rel (0) target = $region25
    $region24: #{tpu_custom_call.1} parent=1 // pred_region
      %59 = dma.done [#allocation3], 16
    $region25: #{tpu_custom_call.1} parent=1 // pred_fallthru
      _
    %60 = vsyncpa [#allocation3], 1
    %61 = vsyncpa [#allocation4], 1

</llo_original>
